<compile_context>
chip_gen: v7x
topology: tpu7x:2x2x1
jax: 0.10.0
libtpu: 0.0.40
codegen_flags: <defaults>
</compile_context>

<pallas_src>
import jax
import jax.numpy as jnp
from jax.experimental import pallas as pl
from jax.experimental.pallas import tpu as pltpu


def _round_up(x: int, m: int) -> int:
    return (x + m - 1) // m * m


def _make_fused_kernel(mxu_dtype):
    """Single-pass kernel: full D per grid step, weights resident in VMEM."""

    def kernel(x_ref, w1_ref, b1_ref, w2_ref, b2_ref, o_ref):
        # x_ref:  (TB, D)        CLS-token rows (sliced by the BlockSpec DMA)
        # w1_ref: (D, inner)     dense weight (in, out)      -- resident
        # b1_ref: (1, inner)     dense bias                  -- resident
        # w2_ref: (inner, C_pad) out_proj weight, lane-padded-- resident
        # b2_ref: (1, C_pad)     out_proj bias, lane-padded  -- resident
        # o_ref:  (TB, C_pad)    logits (lane-dense)
        x = x_ref[...]
        w1 = w1_ref[...]
        if mxu_dtype is not None:          # v5e: feed the MXU bf16, accumulate f32
            x = x.astype(mxu_dtype)
            w1 = w1.astype(mxu_dtype)
        h = jnp.dot(x, w1, preferred_element_type=jnp.float32)
        # f32 epilogue; tanh goes to the EUP slot (effectively free).
        h = jnp.tanh(h + b1_ref[...].astype(jnp.float32))

        # TODO(synk): pooler_dropout > 0 in training mode would need pltpu.prng_*
        # masking; eval-mode dropout is identity, which is what this kernel implements.

        w2 = w2_ref[...]
        if mxu_dtype is not None:
            w2 = w2.astype(mxu_dtype)
        out = jnp.dot(h.astype(w2.dtype), w2, preferred_element_type=jnp.float32)
        o_ref[...] = (out + b2_ref[...].astype(jnp.float32)).astype(o_ref.dtype)

    return kernel


def _make_ktiled_kernel(mxu_dtype):
    """D-axis reduction grid: only a (TK, inner) slab of W1 is live at a time."""

    def kernel(x_ref, w1_ref, b1_ref, w2_ref, b2_ref, o_ref, acc_ref):
        # grid = (batch tiles, D // TK); k axis is "arbitrary" (reduction).
        k = pl.program_id(1)

        @pl.when(k == 0)
        def _():
            acc_ref[...] = jnp.zeros_like(acc_ref)

        x = x_ref[...]
        w1 = w1_ref[...]
        if mxu_dtype is not None:
            x = x.astype(mxu_dtype)
            w1 = w1.astype(mxu_dtype)
        acc_ref[...] += jnp.dot(x, w1, preferred_element_type=jnp.float32)

        @pl.when(k == pl.num_programs(1) - 1)
        def _():
            h = jnp.tanh(acc_ref[...] + b1_ref[...].astype(jnp.float32))
            w2 = w2_ref[...]
            if mxu_dtype is not None:
                w2 = w2.astype(mxu_dtype)
            out = jnp.dot(h.astype(w2.dtype), w2, preferred_element_type=jnp.float32)
            o_ref[...] = (out + b2_ref[...].astype(jnp.float32)).astype(o_ref.dtype)

    return kernel


def classification_head(features, w1, b1, w2, b2, *, mxu_dtype=None):
    """features: [B, T, D]; w1: [D, inner]; b1: [inner]; w2: [inner, C]; b2: [C].

    Returns logits [B, C].  mxu_dtype (e.g. jnp.bfloat16) optionally casts matmul
    operands inside the kernel (recommended on v5e for f32-stored models).
    """
    B, T, D = features.shape
    inner = w1.shape[1]
    C = w2.shape[1]
    out_dtype = features.dtype

    x_is = jnp.dtype(features.dtype).itemsize
    w1_is = jnp.dtype(w1.dtype).itemsize
    b1_is = jnp.dtype(b1.dtype).itemsize
    w2_is = jnp.dtype(w2.dtype).itemsize
    b2_is = jnp.dtype(b2.dtype).itemsize
    o_is = jnp.dtype(out_dtype).itemsize

    # Sublane-packing granularity of the input dtype: 8 rows/vreg f32, 16 bf16, 32 int8/fp8.
    sub = {4: 8, 2: 16, 1: 32}.get(x_is, 8)

    # Batch tile: aim for >= 2 grid steps (so v7x can split the "parallel" axis across
    # its 2 TensorCores) while keeping the last ragged block's dead MXU work small.
    n_steps = max(2, pl.cdiv(B, 256))
    TB = min(256, _round_up(max(pl.cdiv(B, n_steps), 1), sub))
    num_b = pl.cdiv(B, TB)

    # Lane-dense output: pad num_classes to a multiple of 128 lanes (unmasked vst).
    C_pad = _round_up(C, 128)

    # Fuse the CLS-token slice into the kernel's input DMA: a row-major [B, T, D] viewed
    # as [B, T*D] has features[:, 0, :] as its first D columns, so a (TB, D) block at
    # column-block 0 pulls only the T=0 rows from HBM.
    # NOTE: assumes `features` is row-major contiguous; a transposed/strided layout would
    # make this reshape materialize a full B*T*D copy and negate the fused-slice win.
    fuse_cls = (D % 128 == 0)
    if fuse_cls:
        x2d = features.reshape(B, T * D)
    else:
        # TODO(synk): a (TB, 1, D) 3-D block could fuse this slice for unaligned D, but
        # the size-1 sublane block is fragile under the (8,128) rule; slice in XLA here.
        x2d = features[:, 0, :]

    # NO batch padding: the ragged grid + Pallas masking handles B % TB != 0
    # (OOB input rows read garbage, OOB output rows are dropped on store).

    if C_pad != C:
        w2_p = jnp.pad(w2, ((0, 0), (0, C_pad - C)))
        b2_p = jnp.pad(b2, (0, C_pad - C))
    else:
        w2_p, b2_p = w2, b2
    b1_2d = b1.reshape(1, inner)
    b2_2d = b2_p.reshape(1, C_pad)

    # Advisory cost estimate: per-operand itemsizes, weights counted once (resident).
    cost = pl.CostEstimate(
        flops=2 * num_b * TB * inner * (D + C_pad),
        transcendentals=num_b * TB * inner,
        bytes_accessed=(B * D * x_is + D * inner * w1_is + inner * b1_is
                        + inner * C_pad * w2_is + C_pad * b2_is + B * C_pad * o_is),
    )

    # Use a D-axis (reduction) grid when W1 is too big to sit resident in VMEM
    # (v7x: 64 MiB physical / 32 MiB default-scoped per TensorCore).
    ktiled = fuse_cls and (D * inner * w1_is > 24 * 1024 * 1024)

    def _run(single_buffer_resident):
        def resident_spec(shape):
            # Constant index_map => block never changes; a second pipeline buffer is
            # pure VMEM waste, so request single-buffering.
            kw = {"pipeline_mode": pl.Buffered(1)} if single_buffer_resident else {}
            return pl.BlockSpec(shape, lambda *_: (0,) * len(shape), **kw)

        resident_bufs = 1 if single_buffer_resident else 2

        if not ktiled:
            kernel = _make_fused_kernel(mxu_dtype)
            grid = (num_b,)
            in_specs = [
                pl.BlockSpec((TB, D), lambda i: (i, 0)),   # x: tiles over batch, CLS cols
                resident_spec((D, inner)),                 # w1
                resident_spec((1, inner)),                 # b1
                resident_spec((inner, C_pad)),             # w2
                resident_spec((1, C_pad)),                 # b2
            ]
            out_specs = pl.BlockSpec((TB, C_pad), lambda i: (i, 0))
            scratch_shapes = []
            dim_sem = ("parallel",)
            vmem_needed = (
                (D * inner * w1_is + inner * b1_is + inner * C_pad * w2_is + C_pad * b2_is)
                * resident_bufs
                + 2 * TB * D * x_is + 2 * TB * C_pad * o_is          # double-buffered I/O
                + TB * inner * 4 + TB * inner * w2_is + TB * C_pad * 4)  # h / h-cast / out
        else:
            TK = next(t for t in (2048, 1024, 512, 256, 128) if D % t == 0)
            kernel = _make_ktiled_kernel(mxu_dtype)
            grid = (num_b, D // TK)
            in_specs = [
                pl.BlockSpec((TB, TK), lambda i, k: (i, k)),      # x: batch x D-slab
                pl.BlockSpec((TK, inner), lambda i, k: (k, 0)),   # w1: D-slab, pipelined
                resident_spec((1, inner)),                        # b1
                resident_spec((inner, C_pad)),                    # w2
                resident_spec((1, C_pad)),                        # b2
            ]
            out_specs = pl.BlockSpec((TB, C_pad), lambda i, k: (i, 0))
            scratch_shapes = [pltpu.VMEM((TB, inner), jnp.float32)]
            dim_sem = ("parallel", "arbitrary")
            vmem_needed = (
                2 * TK * inner * w1_is
                + (inner * b1_is + inner * C_pad * w2_is + C_pad * b2_is) * resident_bufs
                + 2 * TB * TK * x_is + 2 * TB * C_pad * o_is
                + TB * inner * 4 + TB * inner * w2_is + TB * C_pad * 4)

        vmem_limit = min(max(int(vmem_needed * 1.5) + (4 << 20), 32 << 20), 128 << 20)

        return pl.pallas_call(
            kernel,
            out_shape=jax.ShapeDtypeStruct((B, C_pad), out_dtype),
            grid=grid,
            in_specs=in_specs,
            out_specs=out_specs,
            scratch_shapes=scratch_shapes,
            compiler_params=pltpu.CompilerParams(
                dimension_semantics=dim_sem,
                vmem_limit_bytes=vmem_limit,
            ),
            cost_estimate=cost,
        )(x2d, w1, b1_2d, w2_p, b2_2d)

    try:
        out = _run(single_buffer_resident=True)
    except Exception:
        # Fallback for JAX builds where Buffered(1) (single-buffered resident operands)
        # is not accepted by the TPU pipeline.
        out = _run(single_buffer_resident=False)

    return out[:, :C] if C_pad != C else out


if __name__ == "__main__":
    # Config consistent with the module: input_dim=128, inner_dim=128, num_classes=4,
    # activation_fn="tanh", pooler_dropout=0.0 (inference).
    B, T, D = 2, 8, 128
    inner_dim = 128
    num_classes = 4

    key = jax.random.PRNGKey(0)
    k_feat, k_w1, k_b1, k_w2, k_b2 = jax.random.split(key, 5)

    features = jax.random.normal(k_feat, (B, T, D), dtype=jnp.float32)
    # Linear weights stored as (in, out).
    w1 = jax.random.normal(k_w1, (D, inner_dim), dtype=jnp.float32) * 0.05
    b1 = jax.random.normal(k_b1, (inner_dim,), dtype=jnp.float32) * 0.01
    w2 = jax.random.normal(k_w2, (inner_dim, num_classes), dtype=jnp.float32) * 0.05
    b2 = jax.random.normal(k_b2, (inner_dim if False else num_classes,), dtype=jnp.float32) * 0.01

    logits = classification_head(features, w1, b1, w2, b2)
    logits = jax.block_until_ready(logits)

    # Pure-JAX reference of the same forward pass.
    x_cls = features[:, 0, :]
    ref = jnp.tanh(x_cls @ w1 + b1) @ w2 + b2
    assert logits.shape == (B, num_classes)
    assert jnp.allclose(logits, ref, atol=1e-4, rtol=1e-4)

    # Second config: ragged batch with a multi-step grid (exercises masked last block,
    # class-padding and the >=2-step batch split).
    B2, T2, D2, inner2, C2 = 20, 4, 128, 256, 10
    k_feat2, k_w12, k_b12, k_w22, k_b22 = jax.random.split(jax.random.PRNGKey(1), 5)
    feats2 = jax.random.normal(k_feat2, (B2, T2, D2), dtype=jnp.float32)
    w12 = jax.random.normal(k_w12, (D2, inner2), dtype=jnp.float32) * 0.05
    b12 = jax.random.normal(k_b12, (inner2,), dtype=jnp.float32) * 0.01
    w22 = jax.random.normal(k_w22, (inner2, C2), dtype=jnp.float32) * 0.05
    b22 = jax.random.normal(k_b22, (C2,), dtype=jnp.float32) * 0.01

    logits2 = jax.block_until_ready(classification_head(feats2, w12, b12, w22, b22))
    ref2 = jnp.tanh(feats2[:, 0, :] @ w12 + b12) @ w22 + b22
    assert logits2.shape == (B2, C2)
    assert jnp.allclose(logits2, ref2, atol=1e-4, rtol=1e-4)

    print("KERNEL_OK")
</pallas_src>

<mosaic_0001>
module attributes {stable_mosaic.version = 11 : i64} {
  func.func @kernel(%arg0: i32, %arg1: memref<8x128xf32, #tpu.memory_space<vmem>>, %arg2: memref<128x128xf32, #tpu.memory_space<vmem>>, %arg3: memref<1x128xf32, #tpu.memory_space<vmem>>, %arg4: memref<128x128xf32, #tpu.memory_space<vmem>>, %arg5: memref<1x128xf32, #tpu.memory_space<vmem>>, %arg6: memref<8x128xf32, #tpu.memory_space<vmem>>) attributes {dimension_semantics = [#tpu.dimension_semantics<parallel>], iteration_bounds = array<i64: 1>, scalar_prefetch = 0 : i64, scratch_operands = 0 : i64, tpu.core_type = #tpu.core_type<tc>, window_params = [{transform_indices = @transform_0, window_bounds = array<i64: 8, 128>}, {pipeline_mode = #tpu.pipeline_mode<synchronous>, transform_indices = @transform_1, window_bounds = array<i64: 128, 128>}, {pipeline_mode = #tpu.pipeline_mode<synchronous>, transform_indices = @transform_2, window_bounds = array<i64: 1, 128>}, {pipeline_mode = #tpu.pipeline_mode<synchronous>, transform_indices = @transform_3, window_bounds = array<i64: 128, 128>}, {pipeline_mode = #tpu.pipeline_mode<synchronous>, transform_indices = @transform_4, window_bounds = array<i64: 1, 128>}, {transform_indices = @transform_5, window_bounds = array<i64: 8, 128>}]} {
    %c0 = arith.constant 0 : index
    %c0_0 = arith.constant 0 : index
    %0 = vector.load %arg1[%c0, %c0_0] : memref<8x128xf32, #tpu.memory_space<vmem>>, vector<8x128xf32>
    %c0_1 = arith.constant 0 : index
    %c0_2 = arith.constant 0 : index
    %1 = vector.load %arg2[%c0_1, %c0_2] : memref<128x128xf32, #tpu.memory_space<vmem>>, vector<128x128xf32>
    %cst = arith.constant dense<0.000000e+00> : vector<8x128xf32>
    %2 = tpu.matmul %0, %1, %cst {dimension_numbers = #tpu.dot_dimension_numbers<[1], [0], [0], [1], [0, 0, 1, 1], [], []>} : vector<8x128xf32>, vector<128x128xf32>, vector<8x128xf32> -> vector<8x128xf32>
    %c0_3 = arith.constant 0 : index
    %c0_4 = arith.constant 0 : index
    %3 = vector.load %arg3[%c0_3, %c0_4] : memref<1x128xf32, #tpu.memory_space<vmem>>, vector<1x128xf32>
    %4 = vector.broadcast %3 : vector<1x128xf32> to vector<8x128xf32>
    %5 = arith.addf %2, %4 : vector<8x128xf32>
    %6 = math.tanh %5 : vector<8x128xf32>
    %c0_5 = arith.constant 0 : index
    %c0_6 = arith.constant 0 : index
    %7 = vector.load %arg4[%c0_5, %c0_6] : memref<128x128xf32, #tpu.memory_space<vmem>>, vector<128x128xf32>
    %cst_7 = arith.constant dense<0.000000e+00> : vector<8x128xf32>
    %8 = tpu.matmul %6, %7, %cst_7 {dimension_numbers = #tpu.dot_dimension_numbers<[1], [0], [0], [1], [0, 0, 1, 1], [], []>} : vector<8x128xf32>, vector<128x128xf32>, vector<8x128xf32> -> vector<8x128xf32>
    %c0_8 = arith.constant 0 : index
    %c0_9 = arith.constant 0 : index
    %9 = vector.load %arg5[%c0_8, %c0_9] : memref<1x128xf32, #tpu.memory_space<vmem>>, vector<1x128xf32>
    %10 = vector.broadcast %9 : vector<1x128xf32> to vector<8x128xf32>
    %11 = arith.addf %8, %10 : vector<8x128xf32>
    %c0_10 = arith.constant 0 : index
    %c0_11 = arith.constant 0 : index
    %12 = vector.load %arg6[%c0_10, %c0_11] : memref<8x128xf32, #tpu.memory_space<vmem>>, vector<8x128xf32>
    tpu.vector_store %arg6[%c0_10, %c0_11], %11 {strides = array<i32>} : memref<8x128xf32, #tpu.memory_space<vmem>>, vector<8x128xf32>,
    return
  }
  func.func @transform_0(%arg0: i32) -> (i32, i32) {
    %c0_i32 = arith.constant 0 : i32
    %c0_i32_0 = arith.constant 0 : i32
    return %arg0, %c0_i32 : i32, i32
  }
  func.func @transform_1(%arg0: i32) -> (i32, i32) {
    %c0_i32 = arith.constant 0 : i32
    %c0_i32_0 = arith.constant 0 : i32
    %c0_i32_1 = arith.constant 0 : i32
    return %c0_i32, %c0_i32_0 : i32, i32
  }
  func.func @transform_2(%arg0: i32) -> (i32, i32) {
    %c0_i32 = arith.constant 0 : i32
    %c0_i32_0 = arith.constant 0 : i32
    %c0_i32_1 = arith.constant 0 : i32
    return %c0_i32, %c0_i32_0 : i32, i32
  }
  func.func @transform_3(%arg0: i32) -> (i32, i32) {
    %c0_i32 = arith.constant 0 : i32
    %c0_i32_0 = arith.constant 0 : i32
    %c0_i32_1 = arith.constant 0 : i32
    return %c0_i32, %c0_i32_0 : i32, i32
  }
  func.func @transform_4(%arg0: i32) -> (i32, i32) {
    %c0_i32 = arith.constant 0 : i32
    %c0_i32_0 = arith.constant 0 : i32
    %c0_i32_1 = arith.constant 0 : i32
    return %c0_i32, %c0_i32_0 : i32, i32
  }
  func.func @transform_5(%arg0: i32) -> (i32, i32) {
    %c0_i32 = arith.constant 0 : i32
    %c0_i32_0 = arith.constant 0 : i32
    return %arg0, %c0_i32 : i32, i32
  }
}

module attributes {stable_mosaic.version = 11 : i64} {
  func.func @kernel(%arg0: i32, %arg1: memref<8x128xf32, #tpu.memory_space<vmem>>, %arg2: memref<128x128xf32, #tpu.memory_space<vmem>>, %arg3: memref<1x128xf32, #tpu.memory_space<vmem>>, %arg4: memref<128x128xf32, #tpu.memory_space<vmem>>, %arg5: memref<1x128xf32, #tpu.memory_space<vmem>>, %arg6: memref<8x128xf32, #tpu.memory_space<vmem>>) attributes {dimension_semantics = [#tpu.dimension_semantics<parallel>], iteration_bounds = array<i64: 1>, scalar_prefetch = 0 : i64, scratch_operands = 0 : i64, tpu.core_type = #tpu.core_type<tc>, window_params = [{transform_indices = @transform_0, window_bounds = array<i64: 8, 128>}, {pipeline_mode = #tpu.pipeline_mode<synchronous>, transform_indices = @transform_1, window_bounds = array<i64: 128, 128>}, {pipeline_mode = #tpu.pipeline_mode<synchronous>, transform_indices = @transform_2, window_bounds = array<i64: 1, 128>}, {pipeline_mode = #tpu.pipeline_mode<synchronous>, transform_indices = @transform_3, window_bounds = array<i64: 128, 128>}, {pipeline_mode = #tpu.pipeline_mode<synchronous>, transform_indices = @transform_4, window_bounds = array<i64: 1, 128>}, {transform_indices = @transform_5, window_bounds = array<i64: 8, 128>}]} {
    %c0 = arith.constant 0 : index
    %c0_0 = arith.constant 0 : index
    %0 = vector.load %arg1[%c0, %c0_0] : memref<8x128xf32, #tpu.memory_space<vmem>>, vector<8x128xf32>
    %c0_1 = arith.constant 0 : index
    %c0_2 = arith.constant 0 : index
    %1 = vector.load %arg2[%c0_1, %c0_2] : memref<128x128xf32, #tpu.memory_space<vmem>>, vector<128x128xf32>
    %cst = arith.constant dense<0.000000e+00> : vector<8x128xf32>
    %2 = tpu.matmul %0, %1, %cst {dimension_numbers = #tpu.dot_dimension_numbers<[1], [0], [0], [1], [0, 0, 1, 1], [], []>} : vector<8x128xf32>, vector<128x128xf32>, vector<8x128xf32> -> vector<8x128xf32>
    %c0_3 = arith.constant 0 : index
    %c0_4 = arith.constant 0 : index
    %3 = vector.load %arg3[%c0_3, %c0_4] : memref<1x128xf32, #tpu.memory_space<vmem>>, vector<1x128xf32>
    %4 = vector.broadcast %3 : vector<1x128xf32> to vector<8x128xf32>
    %5 = arith.addf %2, %4 : vector<8x128xf32>
    %6 = math.tanh %5 : vector<8x128xf32>
    %c0_5 = arith.constant 0 : index
    %c0_6 = arith.constant 0 : index
    %7 = vector.load %arg4[%c0_5, %c0_6] : memref<128x128xf32, #tpu.memory_space<vmem>>, vector<128x128xf32>
    %cst_7 = arith.constant dense<0.000000e+00> : vector<8x128xf32>
    %8 = tpu.matmul %6, %7, %cst_7 {dimension_numbers = #tpu.dot_dimension_numbers<[1], [0], [0], [1], [0, 0, 1, 1], [], []>} : vector<8x128xf32>, vector<128x128xf32>, vector<8x128xf32> -> vector<8x128xf32>
    %c0_8 = arith.constant 0 : index
    %c0_9 = arith.constant 0 : index
    %9 = vector.load %arg5[%c0_8, %c0_9] : memref<1x128xf32, #tpu.memory_space<vmem>>, vector<1x128xf32>
    %10 = vector.broadcast %9 : vector<1x128xf32> to vector<8x128xf32>
    %11 = arith.addf %8, %10 : vector<8x128xf32>
    %c0_10 = arith.constant 0 : index
    %c0_11 = arith.constant 0 : index
    %12 = vector.load %arg6[%c0_10, %c0_11] : memref<8x128xf32, #tpu.memory_space<vmem>>, vector<8x128xf32>
    tpu.vector_store %arg6[%c0_10, %c0_11], %11 {strides = array<i32>} : memref<8x128xf32, #tpu.memory_space<vmem>>, vector<8x128xf32>,
    return
  }
  func.func @transform_0(%arg0: i32) -> (i32, i32) {
    %c0_i32 = arith.constant 0 : i32
    %c0_i32_0 = arith.constant 0 : i32
    return %arg0, %c0_i32 : i32, i32
  }
  func.func @transform_1(%arg0: i32) -> (i32, i32) {
    %c0_i32 = arith.constant 0 : i32
    %c0_i32_0 = arith.constant 0 : i32
    %c0_i32_1 = arith.constant 0 : i32
    return %c0_i32, %c0_i32_0 : i32, i32
  }
  func.func @transform_2(%arg0: i32) -> (i32, i32) {
    %c0_i32 = arith.constant 0 : i32
    %c0_i32_0 = arith.constant 0 : i32
    %c0_i32_1 = arith.constant 0 : i32
    return %c0_i32, %c0_i32_0 : i32, i32
  }
  func.func @transform_3(%arg0: i32) -> (i32, i32) {
    %c0_i32 = arith.constant 0 : i32
    %c0_i32_0 = arith.constant 0 : i32
    %c0_i32_1 = arith.constant 0 : i32
    return %c0_i32, %c0_i32_0 : i32, i32
  }
  func.func @transform_4(%arg0: i32) -> (i32, i32) {
    %c0_i32 = arith.constant 0 : i32
    %c0_i32_0 = arith.constant 0 : i32
    %c0_i32_1 = arith.constant 0 : i32
    return %c0_i32, %c0_i32_0 : i32, i32
  }
  func.func @transform_5(%arg0: i32) -> (i32, i32) {
    %c0_i32 = arith.constant 0 : i32
    %c0_i32_0 = arith.constant 0 : i32
    return %arg0, %c0_i32 : i32, i32
  }
}

</mosaic_0001>

<llo_original>
// kernel: tpu_custom_call.1
$region0: #{tpu_custom_call.1}
  #allocation0 [shape = 'u32[]', space=smem, size = 0x4, offset = 0x4, fixed_abs, tag = 'smem constant byte address 0x4 - core index']
  #allocation1 [shape = 'u32[144,128]{1,0:T(1,128)}', space=vmem, size = 0x12000, scoped, tag = 'internal scratch']
  %s0 = inlined_call_operand.hbm [shape: f32[2,1024], index: 0, kind: input, shape index: {}]
  %s1 = inlined_call_operand.hbm [shape: f32[128,128], index: 1, kind: input, shape index: {}]
  %s2 = inlined_call_operand.vmem [shape: f32[1,128], index: 2, kind: input, shape index: {}]
  %s3 = inlined_call_operand.hbm [shape: f32[128,128], index: 3, kind: input, shape index: {}]
  %s4 = inlined_call_operand.vmem [shape: f32[1,128], index: 4, kind: input, shape index: {}]
  %s5 = inlined_call_operand.hbm [shape: f32[2,128], index: 5, kind: output, shape index: {}]
  %s6 = sld [smem:[#allocation0]]
  $region42: #{tpu_custom_call.1} parent=0
    _
  %s8 = ssub.s32 1, %s6
  %s9 = scalar_select 0, %s8, %s6
  $region1: #{tpu_custom_call.1} parent=0
    #allocation2 [shape = 'u8[4096]{0}', space=vmem, size = 0x1000, scoped, tag = 'input window, operand 0, single buffered']
    #allocation3 [shape = 's32[1]{0}', space=sflag, size = 0x4, scoped, tag = 'scoped memory for tpu_custom_call.1']
    #allocation4 [shape = 's32[1]{0}', space=sflag, size = 0x4, scoped, tag = 'scoped memory for tpu_custom_call.1']
    #allocation5 [shape = 'u8[65536]{0}', space=vmem, size = 0x10000, scoped, tag = 'input window, operand 1, single buffered']
    #allocation6 [shape = 's32[1]{0}', space=sflag, size = 0x4, scoped, tag = 'scoped memory for tpu_custom_call.1']
    #allocation7 [shape = 'u8[65536]{0}', space=vmem, size = 0x10000, scoped, tag = 'input window, operand 3, single buffered']
    #allocation8 [shape = 'u8[4096]{0}', space=vmem, size = 0x1000, scoped, tag = 'output window, operand 0, single buffered']
    %10 = vsyncpa [#allocation3], 0
    %11 = vsyncpa [#allocation6], 0
    %12 = vsyncpa [#allocation4], 0
    // Predicated region
    $region2: #{tpu_custom_call.1} parent=1 // pred_check
      _
    $region3: #{tpu_custom_call.1} parent=1 // pred_check_branch
      %14 = sbr.rel (0) target = $region5
    $region4: #{tpu_custom_call.1} parent=1 // pred_region
      %s16 = ssub.s32 128, 32
      %17 = vsyncadd [#allocation3], %s16
      %s18 = sshll.u32 [#allocation2], 4
      %s19 = int_to_ptr.vmem [resolvable:$true] %s18
      %24 = dma.hbm_to_vmem [thread:$0]  %s0, 32, %s19, [#allocation3], 256, 32, 2
    $region5: #{tpu_custom_call.1} parent=1 // pred_fallthru
      _
    // Predicated region
    $region6: #{tpu_custom_call.1} parent=1 // pred_check
      _
    $region7: #{tpu_custom_call.1} parent=1 // pred_check_branch
      %26 = sbr.rel (0) target = $region9
    $region8: #{tpu_custom_call.1} parent=1 // pred_region
      %s28 = ssub.s32 2048, 2048
      %29 = vsyncadd [#allocation6], %s28
      %s30 = sshll.u32 [#allocation5], 4
      %s31 = int_to_ptr.vmem [resolvable:$true] %s30
      %36 = dma.hbm_to_vmem [thread:$0]  %s1, 2048, %s31, [#allocation6], 128, 128, 8
    $region9: #{tpu_custom_call.1} parent=1 // pred_fallthru
      _
    // Predicated region
    $region10: #{tpu_custom_call.1} parent=1 // pred_check
      _
    $region11: #{tpu_custom_call.1} parent=1 // pred_check_branch
      %38 = sbr.rel (0) target = $region13
    $region12: #{tpu_custom_call.1} parent=1 // pred_region
      _
    $region13: #{tpu_custom_call.1} parent=1 // pred_fallthru
      _
    // Predicated region
    $region14: #{tpu_custom_call.1} parent=1 // pred_check
      _
    $region15: #{tpu_custom_call.1} parent=1 // pred_check_branch
      %40 = sbr.rel (0) target = $region17
    $region16: #{tpu_custom_call.1} parent=1 // pred_region
      %s42 = ssub.s32 2048, 2048
      %43 = vsyncadd [#allocation6], %s42
      %s44 = sshll.u32 [#allocation7], 4
      %s45 = int_to_ptr.vmem [resolvable:$true] %s44
      %50 = dma.hbm_to_vmem [thread:$0]  %s3, 2048, %s45, [#allocation6], 128, 128, 8
    $region17: #{tpu_custom_call.1} parent=1 // pred_fallthru
      _
    // Predicated region
    $region18: #{tpu_custom_call.1} parent=1 // pred_check
      _
    $region19: #{tpu_custom_call.1} parent=1 // pred_check_branch
      %52 = sbr.rel (0) target = $region21
    $region20: #{tpu_custom_call.1} parent=1 // pred_region
      _
    $region21: #{tpu_custom_call.1} parent=1 // pred_fallthru
      _
    // Predicated region
    $region22: #{tpu_custom_call.1} parent=1 // pred_check
      _
    $region23: #{tpu_custom_call.1} parent=1 // pred_check_branch
      %54 = sbr.rel (0) target = $region25
    $region24: #{tpu_custom_call.1} parent=1 // pred_region
      %55 = dma.done [#allocation3], 128
    $region25: #{tpu_custom_call.1} parent=1 // pred_fallthru
      _
    // Predicated region
    $region26: #{tpu_custom_call.1} parent=1 // pred_check
      _
    $region27: #{tpu_custom_call.1} parent=1 // pred_check_branch
      %57 = sbr.rel (0) target = $region29
    $region28: #{tpu_custom_call.1} parent=1 // pred_region
      %58 = dma.done [#allocation6], 2048
    $region29: #{tpu_custom_call.1} parent=1 // pred_fallthru
      _
    // Predicated region
    $region30: #{tpu_custom_call.1} parent=1 // pred_check
      _
    $region31: #{tpu_custom_call.1} parent=1 // pred_check_branch
      %60 = sbr.rel (0) target = $region33
    $region32: #{tpu_custom_call.1} parent=1 // pred_region
      %61 = dma.done [#allocation6], 2048
    $region33: #{tpu_custom_call.1} parent=1 // pred_fallthru
      _
    %v62 = vld [vmem:[#allocation2] sm:$0xff]
    %v63 = vld [vmem:[#allocation5] sm:$0xff]
    %v64 = vld [vmem:[#allocation5 + $0x8] sm:$0xff]
    %v65 = vld [vmem:[#allocation5 + $0x10] sm:$0xff]
    %v66 = vld [vmem:[#allocation5 + $0x18] sm:$0xff]
    %v67 = vld [vmem:[#allocation5 + $0x20] sm:$0xff]
    %v68 = vld [vmem:[#allocation5 + $0x28] sm:$0xff]
    %v69 = vld [vmem:[#allocation5 + $0x30] sm:$0xff]
    %v70 = vld [vmem:[#allocation5 + $0x38] sm:$0xff]
    %v71 = vld [vmem:[#allocation5 + $0x40] sm:$0xff]
    %v72 = vld [vmem:[#allocation5 + $0x48] sm:$0xff]
    %v73 = vld [vmem:[#allocation5 + $0x50] sm:$0xff]
    %v74 = vld [vmem:[#allocation5 + $0x58] sm:$0xff]
    %v75 = vld [vmem:[#allocation5 + $0x60] sm:$0xff]
    %v76 = vld [vmem:[#allocation5 + $0x68] sm:$0xff]
    %v77 = vld [vmem:[#allocation5 + $0x70] sm:$0xff]
    %v78 = vld [vmem:[#allocation5 + $0x78] sm:$0xff]
    %v79 = vld [vmem:[%s2] sm:$0x1]
    %v81 = vlaneseq
    %v82 = vshrl.u32 %v81, 7
    %v83 = vsub.s32 0, %v82
    %v84 = vrot.slane %v79, %v83
    %86 = vmatprep.subr.mxu0 0.0
    %87 = vmatpush1.msra.mxu0 %v63
    %88 = vmatprep.subr.mxu0 0.0
    %89 = vmatpush1.msra.mxu0 %v64
    %90 = vmatprep.subr.mxu0 0.0
    %91 = vmatpush1.msra.mxu0 %v65
    %92 = vmatprep.subr.mxu0 0.0
    %93 = vmatpush1.msra.mxu0 %v66
    %94 = vmatprep.subr.mxu0 0.0
    %95 = vmatpush1.msra.mxu0 %v67
    %96 = vmatprep.subr.mxu0 0.0
    %97 = vmatpush1.msra.mxu0 %v68
    %98 = vmatprep.subr.mxu0 0.0
    %99 = vmatpush1.msra.mxu0 %v69
    %100 = vmatprep.subr.mxu0 0.0
    %101 = vmatpush1.msra.mxu0 %v70
    %102 = vmatprep.subr.mxu0 0.0
    %103 = vmatpush1.msra.mxu0 %v71
    %104 = vmatprep.subr.mxu0 0.0
    %105 = vmatpush1.msra.mxu0 %v72
    %106 = vmatprep.subr.mxu0 0.0
    %107 = vmatpush1.msra.mxu0 %v73
    %108 = vmatprep.subr.mxu0 0.0
    %109 = vmatpush1.msra.mxu0 %v74
    %110 = vmatprep.subr.mxu0 0.0
    %111 = vmatpush1.msra.mxu0 %v75
    %112 = vmatprep.subr.mxu0 0.0
    %113 = vmatpush1.msra.mxu0 %v76
    %114 = vmatprep.subr.mxu0 0.0
    %115 = vmatpush1.msra.mxu0 %v77
    %116 = vmatprep.subr.mxu0 0.0
    %117 = vmatpush1.msra.mxu0 %v78
    %118 = vmatprep.subr.mxu0 0.0
    %119 = vmatpush1.msra.mxu0 0.0
    %120 = vmatprep.subr.mxu0 0.0
    %121 = vmatpush1.msra.mxu0 0.0
    %122 = vmatprep.subr.mxu0 0.0
    %123 = vmatpush1.msra.mxu0 0.0
    %124 = vmatprep.subr.mxu0 0.0
    %125 = vmatpush1.msra.mxu0 0.0
    %126 = vmatprep.subr.mxu0 0.0
    %127 = vmatpush1.msra.mxu0 0.0
    %128 = vmatprep.subr.mxu0 0.0
    %129 = vmatpush1.msra.mxu0 0.0
    %130 = vmatprep.subr.mxu0 0.0
    %131 = vmatpush1.msra.mxu0 0.0
    %132 = vmatprep.subr.mxu0 0.0
    %133 = vmatpush1.msra.mxu0 0.0
    %134 = vmatprep.subr.mxu0 0.0
    %135 = vmatpush1.msra.mxu0 0.0
    %136 = vmatprep.subr.mxu0 0.0
    %137 = vmatpush1.msra.mxu0 0.0
    %138 = vmatprep.subr.mxu0 0.0
    %139 = vmatpush1.msra.mxu0 0.0
    %140 = vmatprep.subr.mxu0 0.0
    %141 = vmatpush1.msra.mxu0 0.0
    %142 = vmatprep.subr.mxu0 0.0
    %143 = vmatpush1.msra.mxu0 0.0
    %144 = vmatprep.subr.mxu0 0.0
    %145 = vmatpush1.msra.mxu0 0.0
    %146 = vmatprep.subr.mxu0 0.0
    %147 = vmatpush1.msra.mxu0 0.0
    %148 = vmatprep.subr.mxu0 0.0
    %149 = vmatpush1.msra.mxu0 0.0
    %150 = vmatprep.mubr.f32.mxu0 0.0
    %151 = vmatmul.mubr.f32.gmra.mrb[0].mxu0 %v62
    %v152 = vpop.f32.mrb[0].mxu0
    %v153 = vadd.f32 %v84, %v152
    %v154 = vpop.f32.mrb[0].mxu0
    %155 = vdwg.mxu0
    %v156 = vtanh.pop %v153
    %v157 = vld [vmem:[#allocation7] sm:$0xff]
    %v158 = vld [vmem:[#allocation7 + $0x8] sm:$0xff]
    %v159 = vld [vmem:[#allocation7 + $0x10] sm:$0xff]
    %v160 = vld [vmem:[#allocation7 + $0x18] sm:$0xff]
    %v161 = vld [vmem:[#allocation7 + $0x20] sm:$0xff]
    %v162 = vld [vmem:[#allocation7 + $0x28] sm:$0xff]
    %v163 = vld [vmem:[#allocation7 + $0x30] sm:$0xff]
    %v164 = vld [vmem:[#allocation7 + $0x38] sm:$0xff]
    %v165 = vld [vmem:[#allocation7 + $0x40] sm:$0xff]
    %v166 = vld [vmem:[#allocation7 + $0x48] sm:$0xff]
    %v167 = vld [vmem:[#allocation7 + $0x50] sm:$0xff]
    %v168 = vld [vmem:[#allocation7 + $0x58] sm:$0xff]
    %v169 = vld [vmem:[#allocation7 + $0x60] sm:$0xff]
    %v170 = vld [vmem:[#allocation7 + $0x68] sm:$0xff]
    %v171 = vld [vmem:[#allocation7 + $0x70] sm:$0xff]
    %v172 = vld [vmem:[#allocation7 + $0x78] sm:$0xff]
    %v173 = vld [vmem:[%s4] sm:$0x1]
    %v175 = vlaneseq
    %v176 = vshrl.u32 %v175, 7
    %v177 = vsub.s32 0, %v176
    %v178 = vrot.slane %v173, %v177
    %180 = vmatprep.subr.mxu0 0.0
    %181 = vmatpush1.msra.mxu0 %v157
    %182 = vmatprep.subr.mxu0 0.0
    %183 = vmatpush1.msra.mxu0 %v158
    %184 = vmatprep.subr.mxu0 0.0
    %185 = vmatpush1.msra.mxu0 %v159
    %186 = vmatprep.subr.mxu0 0.0
    %187 = vmatpush1.msra.mxu0 %v160
    %188 = vmatprep.subr.mxu0 0.0
    %189 = vmatpush1.msra.mxu0 %v161
    %190 = vmatprep.subr.mxu0 0.0
    %191 = vmatpush1.msra.mxu0 %v162
    %192 = vmatprep.subr.mxu0 0.0
    %193 = vmatpush1.msra.mxu0 %v163
    %194 = vmatprep.subr.mxu0 0.0
    %195 = vmatpush1.msra.mxu0 %v164
    %196 = vmatprep.subr.mxu0 0.0
    %197 = vmatpush1.msra.mxu0 %v165
    %198 = vmatprep.subr.mxu0 0.0
    %199 = vmatpush1.msra.mxu0 %v166
    %200 = vmatprep.subr.mxu0 0.0
    %201 = vmatpush1.msra.mxu0 %v167
    %202 = vmatprep.subr.mxu0 0.0
    %203 = vmatpush1.msra.mxu0 %v168
    %204 = vmatprep.subr.mxu0 0.0
    %205 = vmatpush1.msra.mxu0 %v169
    %206 = vmatprep.subr.mxu0 0.0
    %207 = vmatpush1.msra.mxu0 %v170
    %208 = vmatprep.subr.mxu0 0.0
    %209 = vmatpush1.msra.mxu0 %v171
    %210 = vmatprep.subr.mxu0 0.0
    %211 = vmatpush1.msra.mxu0 %v172
    %212 = vmatprep.subr.mxu0 0.0
    %213 = vmatpush1.msra.mxu0 0.0
    %214 = vmatprep.subr.mxu0 0.0
    %215 = vmatpush1.msra.mxu0 0.0
    %216 = vmatprep.subr.mxu0 0.0
    %217 = vmatpush1.msra.mxu0 0.0
    %218 = vmatprep.subr.mxu0 0.0
    %219 = vmatpush1.msra.mxu0 0.0
    %220 = vmatprep.subr.mxu0 0.0
    %221 = vmatpush1.msra.mxu0 0.0
    %222 = vmatprep.subr.mxu0 0.0
    %223 = vmatpush1.msra.mxu0 0.0
    %224 = vmatprep.subr.mxu0 0.0
    %225 = vmatpush1.msra.mxu0 0.0
    %226 = vmatprep.subr.mxu0 0.0
    %227 = vmatpush1.msra.mxu0 0.0
    %228 = vmatprep.subr.mxu0 0.0
    %229 = vmatpush1.msra.mxu0 0.0
    %230 = vmatprep.subr.mxu0 0.0
    %231 = vmatpush1.msra.mxu0 0.0
    %232 = vmatprep.subr.mxu0 0.0
    %233 = vmatpush1.msra.mxu0 0.0
    %234 = vmatprep.subr.mxu0 0.0
    %235 = vmatpush1.msra.mxu0 0.0
    %236 = vmatprep.subr.mxu0 0.0
    %237 = vmatpush1.msra.mxu0 0.0
    %238 = vmatprep.subr.mxu0 0.0
    %239 = vmatpush1.msra.mxu0 0.0
    %240 = vmatprep.subr.mxu0 0.0
    %241 = vmatpush1.msra.mxu0 0.0
    %242 = vmatprep.subr.mxu0 0.0
    %243 = vmatpush1.msra.mxu0 0.0
    %244 = vmatprep.mubr.f32.mxu0 0.0
    %245 = vmatmul.mubr.f32.gmra.mrb[0].mxu0 %v156
    %v246 = vpop.f32.mrb[0].mxu0
    %v247 = vadd.f32 %v178, %v246
    %v248 = vpop.f32.mrb[0].mxu0
    %249 = vdwg.mxu0
    %250 = vst [vmem:[#allocation8] sm:$0xff] %v247
    // Predicated region
    $region34: #{tpu_custom_call.1} parent=1 // pred_check
      _
    $region35: #{tpu_custom_call.1} parent=1 // pred_check_branch
      %252 = sbr.rel (0) target = $region37
    $region36: #{tpu_custom_call.1} parent=1 // pred_region
      %s254 = ssub.s32 128, 32
      %255 = vsyncadd [#allocation4], %s254
      %s256 = sshll.u32 [#allocation8], 4
      %s257 = int_to_ptr.vmem [resolvable:$true] %s256
      %262 = dma.vmem_to_hbm [thread:$0]  %s257, 32, %s5, [#allocation4], 32, 32, 2
    $region37: #{tpu_custom_call.1} parent=1 // pred_fallthru
      _
    // Predicated region
    $region38: #{tpu_custom_call.1} parent=1 // pred_check
      _
    $region39: #{tpu_custom_call.1} parent=1 // pred_check_branch
      %264 = sbr.rel (0) target = $region41
    $region40: #{tpu_custom_call.1} parent=1 // pred_region
      %265 = dma.done [#allocation4], 128
    $region41: #{tpu_custom_call.1} parent=1 // pred_fallthru
      _
    %266 = vsyncpa [#allocation3], 1
    %267 = vsyncpa [#allocation6], 1
    %268 = vsyncpa [#allocation4], 1

// kernel: tpu_custom_call.1
$region0: #{tpu_custom_call.1}
  #allocation0 [shape = 'u32[]', space=smem, size = 0x4, offset = 0x4, fixed_abs, tag = 'smem constant byte address 0x4 - core index']
  #allocation1 [shape = 'u32[144,128]{1,0:T(1,128)}', space=vmem, size = 0x12000, scoped, tag = 'internal scratch']
  %s0 = inlined_call_operand.hbm [shape: f32[2,1024], index: 0, kind: input, shape index: {}]
  %s1 = inlined_call_operand.hbm [shape: f32[128,128], index: 1, kind: input, shape index: {}]
  %s2 = inlined_call_operand.vmem [shape: f32[1,128], index: 2, kind: input, shape index: {}]
  %s3 = inlined_call_operand.hbm [shape: f32[128,128], index: 3, kind: input, shape index: {}]
  %s4 = inlined_call_operand.vmem [shape: f32[1,128], index: 4, kind: input, shape index: {}]
  %s5 = inlined_call_operand.hbm [shape: f32[2,128], index: 5, kind: output, shape index: {}]
  %s6 = sld [smem:[#allocation0]]
  $region42: #{tpu_custom_call.1} parent=0
    _
  %s8 = ssub.s32 1, %s6
  %s9 = scalar_select 0, %s8, %s6
  $region1: #{tpu_custom_call.1} parent=0
    #allocation2 [shape = 'u8[4096]{0}', space=vmem, size = 0x1000, scoped, tag = 'input window, operand 0, single buffered']
    #allocation3 [shape = 's32[1]{0}', space=sflag, size = 0x4, scoped, tag = 'scoped memory for tpu_custom_call.1']
    #allocation4 [shape = 's32[1]{0}', space=sflag, size = 0x4, scoped, tag = 'scoped memory for tpu_custom_call.1']
    #allocation5 [shape = 'u8[65536]{0}', space=vmem, size = 0x10000, scoped, tag = 'input window, operand 1, single buffered']
    #allocation6 [shape = 's32[1]{0}', space=sflag, size = 0x4, scoped, tag = 'scoped memory for tpu_custom_call.1']
    #allocation7 [shape = 'u8[65536]{0}', space=vmem, size = 0x10000, scoped, tag = 'input window, operand 3, single buffered']
    #allocation8 [shape = 'u8[4096]{0}', space=vmem, size = 0x1000, scoped, tag = 'output window, operand 0, single buffered']
    %10 = vsyncpa [#allocation3], 0
    %11 = vsyncpa [#allocation6], 0
    %12 = vsyncpa [#allocation4], 0
    // Predicated region
    $region2: #{tpu_custom_call.1} parent=1 // pred_check
      _
    $region3: #{tpu_custom_call.1} parent=1 // pred_check_branch
      %14 = sbr.rel (0) target = $region5
    $region4: #{tpu_custom_call.1} parent=1 // pred_region
      %s16 = ssub.s32 128, 32
      %17 = vsyncadd [#allocation3], %s16
      %s18 = sshll.u32 [#allocation2], 4
      %s19 = int_to_ptr.vmem [resolvable:$true] %s18
      %24 = dma.hbm_to_vmem [thread:$0]  %s0, 32, %s19, [#allocation3], 256, 32, 2
    $region5: #{tpu_custom_call.1} parent=1 // pred_fallthru
      _
    // Predicated region
    $region6: #{tpu_custom_call.1} parent=1 // pred_check
      _
    $region7: #{tpu_custom_call.1} parent=1 // pred_check_branch
      %26 = sbr.rel (0) target = $region9
    $region8: #{tpu_custom_call.1} parent=1 // pred_region
      %s28 = ssub.s32 2048, 2048
      %29 = vsyncadd [#allocation6], %s28
      %s30 = sshll.u32 [#allocation5], 4
      %s31 = int_to_ptr.vmem [resolvable:$true] %s30
      %36 = dma.hbm_to_vmem [thread:$0]  %s1, 2048, %s31, [#allocation6], 128, 128, 8
    $region9: #{tpu_custom_call.1} parent=1 // pred_fallthru
      _
    // Predicated region
    $region10: #{tpu_custom_call.1} parent=1 // pred_check
      _
    $region11: #{tpu_custom_call.1} parent=1 // pred_check_branch
      %38 = sbr.rel (0) target = $region13
    $region12: #{tpu_custom_call.1} parent=1 // pred_region
      _
    $region13: #{tpu_custom_call.1} parent=1 // pred_fallthru
      _
    // Predicated region
    $region14: #{tpu_custom_call.1} parent=1 // pred_check
      _
    $region15: #{tpu_custom_call.1} parent=1 // pred_check_branch
      %40 = sbr.rel (0) target = $region17
    $region16: #{tpu_custom_call.1} parent=1 // pred_region
      %s42 = ssub.s32 2048, 2048
      %43 = vsyncadd [#allocation6], %s42
      %s44 = sshll.u32 [#allocation7], 4
      %s45 = int_to_ptr.vmem [resolvable:$true] %s44
      %50 = dma.hbm_to_vmem [thread:$0]  %s3, 2048, %s45, [#allocation6], 128, 128, 8
    $region17: #{tpu_custom_call.1} parent=1 // pred_fallthru
      _
    // Predicated region
    $region18: #{tpu_custom_call.1} parent=1 // pred_check
      _
    $region19: #{tpu_custom_call.1} parent=1 // pred_check_branch
      %52 = sbr.rel (0) target = $region21
    $region20: #{tpu_custom_call.1} parent=1 // pred_region
      _
    $region21: #{tpu_custom_call.1} parent=1 // pred_fallthru
      _
    // Predicated region
    $region22: #{tpu_custom_call.1} parent=1 // pred_check
      _
    $region23: #{tpu_custom_call.1} parent=1 // pred_check_branch
      %54 = sbr.rel (0) target = $region25
    $region24: #{tpu_custom_call.1} parent=1 // pred_region
      %55 = dma.done [#allocation3], 128
    $region25: #{tpu_custom_call.1} parent=1 // pred_fallthru
      _
    // Predicated region
    $region26: #{tpu_custom_call.1} parent=1 // pred_check
      _
    $region27: #{tpu_custom_call.1} parent=1 // pred_check_branch
      %57 = sbr.rel (0) target = $region29
    $region28: #{tpu_custom_call.1} parent=1 // pred_region
      %58 = dma.done [#allocation6], 2048
    $region29: #{tpu_custom_call.1} parent=1 // pred_fallthru
      _
    // Predicated region
    $region30: #{tpu_custom_call.1} parent=1 // pred_check
      _
    $region31: #{tpu_custom_call.1} parent=1 // pred_check_branch
      %60 = sbr.rel (0) target = $region33
    $region32: #{tpu_custom_call.1} parent=1 // pred_region
      %61 = dma.done [#allocation6], 2048
    $region33: #{tpu_custom_call.1} parent=1 // pred_fallthru
      _
    %v62 = vld [vmem:[#allocation2] sm:$0xff]
    %v63 = vld [vmem:[#allocation5] sm:$0xff]
    %v64 = vld [vmem:[#allocation5 + $0x8] sm:$0xff]
    %v65 = vld [vmem:[#allocation5 + $0x10] sm:$0xff]
    %v66 = vld [vmem:[#allocation5 + $0x18] sm:$0xff]
    %v67 = vld [vmem:[#allocation5 + $0x20] sm:$0xff]
    %v68 = vld [vmem:[#allocation5 + $0x28] sm:$0xff]
    %v69 = vld [vmem:[#allocation5 + $0x30] sm:$0xff]
    %v70 = vld [vmem:[#allocation5 + $0x38] sm:$0xff]
    %v71 = vld [vmem:[#allocation5 + $0x40] sm:$0xff]
    %v72 = vld [vmem:[#allocation5 + $0x48] sm:$0xff]
    %v73 = vld [vmem:[#allocation5 + $0x50] sm:$0xff]
    %v74 = vld [vmem:[#allocation5 + $0x58] sm:$0xff]
    %v75 = vld [vmem:[#allocation5 + $0x60] sm:$0xff]
    %v76 = vld [vmem:[#allocation5 + $0x68] sm:$0xff]
    %v77 = vld [vmem:[#allocation5 + $0x70] sm:$0xff]
    %v78 = vld [vmem:[#allocation5 + $0x78] sm:$0xff]
    %v79 = vld [vmem:[%s2] sm:$0x1]
    %v81 = vlaneseq
    %v82 = vshrl.u32 %v81, 7
    %v83 = vsub.s32 0, %v82
    %v84 = vrot.slane %v79, %v83
    %86 = vmatprep.subr.mxu0 0.0
    %87 = vmatpush1.msra.mxu0 %v63
    %88 = vmatprep.subr.mxu0 0.0
    %89 = vmatpush1.msra.mxu0 %v64
    %90 = vmatprep.subr.mxu0 0.0
    %91 = vmatpush1.msra.mxu0 %v65
    %92 = vmatprep.subr.mxu0 0.0
    %93 = vmatpush1.msra.mxu0 %v66
    %94 = vmatprep.subr.mxu0 0.0
    %95 = vmatpush1.msra.mxu0 %v67
    %96 = vmatprep.subr.mxu0 0.0
    %97 = vmatpush1.msra.mxu0 %v68
    %98 = vmatprep.subr.mxu0 0.0
    %99 = vmatpush1.msra.mxu0 %v69
    %100 = vmatprep.subr.mxu0 0.0
    %101 = vmatpush1.msra.mxu0 %v70
    %102 = vmatprep.subr.mxu0 0.0
    %103 = vmatpush1.msra.mxu0 %v71
    %104 = vmatprep.subr.mxu0 0.0
    %105 = vmatpush1.msra.mxu0 %v72
    %106 = vmatprep.subr.mxu0 0.0
    %107 = vmatpush1.msra.mxu0 %v73
    %108 = vmatprep.subr.mxu0 0.0
    %109 = vmatpush1.msra.mxu0 %v74
    %110 = vmatprep.subr.mxu0 0.0
    %111 = vmatpush1.msra.mxu0 %v75
    %112 = vmatprep.subr.mxu0 0.0
    %113 = vmatpush1.msra.mxu0 %v76
    %114 = vmatprep.subr.mxu0 0.0
    %115 = vmatpush1.msra.mxu0 %v77
    %116 = vmatprep.subr.mxu0 0.0
    %117 = vmatpush1.msra.mxu0 %v78
    %118 = vmatprep.subr.mxu0 0.0
    %119 = vmatpush1.msra.mxu0 0.0
    %120 = vmatprep.subr.mxu0 0.0
    %121 = vmatpush1.msra.mxu0 0.0
    %122 = vmatprep.subr.mxu0 0.0
    %123 = vmatpush1.msra.mxu0 0.0
    %124 = vmatprep.subr.mxu0 0.0
    %125 = vmatpush1.msra.mxu0 0.0
    %126 = vmatprep.subr.mxu0 0.0
    %127 = vmatpush1.msra.mxu0 0.0
    %128 = vmatprep.subr.mxu0 0.0
    %129 = vmatpush1.msra.mxu0 0.0
    %130 = vmatprep.subr.mxu0 0.0
    %131 = vmatpush1.msra.mxu0 0.0
    %132 = vmatprep.subr.mxu0 0.0
    %133 = vmatpush1.msra.mxu0 0.0
    %134 = vmatprep.subr.mxu0 0.0
    %135 = vmatpush1.msra.mxu0 0.0
    %136 = vmatprep.subr.mxu0 0.0
    %137 = vmatpush1.msra.mxu0 0.0
    %138 = vmatprep.subr.mxu0 0.0
    %139 = vmatpush1.msra.mxu0 0.0
    %140 = vmatprep.subr.mxu0 0.0
    %141 = vmatpush1.msra.mxu0 0.0
    %142 = vmatprep.subr.mxu0 0.0
    %143 = vmatpush1.msra.mxu0 0.0
    %144 = vmatprep.subr.mxu0 0.0
    %145 = vmatpush1.msra.mxu0 0.0
    %146 = vmatprep.subr.mxu0 0.0
    %147 = vmatpush1.msra.mxu0 0.0
    %148 = vmatprep.subr.mxu0 0.0
    %149 = vmatpush1.msra.mxu0 0.0
    %150 = vmatprep.mubr.f32.mxu0 0.0
    %151 = vmatmul.mubr.f32.gmra.mrb[0].mxu0 %v62
    %v152 = vpop.f32.mrb[0].mxu0
    %v153 = vadd.f32 %v84, %v152
    %v154 = vpop.f32.mrb[0].mxu0
    %155 = vdwg.mxu0
    %v156 = vtanh.pop %v153
    %v157 = vld [vmem:[#allocation7] sm:$0xff]
    %v158 = vld [vmem:[#allocation7 + $0x8] sm:$0xff]
    %v159 = vld [vmem:[#allocation7 + $0x10] sm:$0xff]
    %v160 = vld [vmem:[#allocation7 + $0x18] sm:$0xff]
    %v161 = vld [vmem:[#allocation7 + $0x20] sm:$0xff]
    %v162 = vld [vmem:[#allocation7 + $0x28] sm:$0xff]
    %v163 = vld [vmem:[#allocation7 + $0x30] sm:$0xff]
    %v164 = vld [vmem:[#allocation7 + $0x38] sm:$0xff]
    %v165 = vld [vmem:[#allocation7 + $0x40] sm:$0xff]
    %v166 = vld [vmem:[#allocation7 + $0x48] sm:$0xff]
    %v167 = vld [vmem:[#allocation7 + $0x50] sm:$0xff]
    %v168 = vld [vmem:[#allocation7 + $0x58] sm:$0xff]
    %v169 = vld [vmem:[#allocation7 + $0x60] sm:$0xff]
    %v170 = vld [vmem:[#allocation7 + $0x68] sm:$0xff]
    %v171 = vld [vmem:[#allocation7 + $0x70] sm:$0xff]
    %v172 = vld [vmem:[#allocation7 + $0x78] sm:$0xff]
    %v173 = vld [vmem:[%s4] sm:$0x1]
    %v175 = vlaneseq
    %v176 = vshrl.u32 %v175, 7
    %v177 = vsub.s32 0, %v176
    %v178 = vrot.slane %v173, %v177
    %180 = vmatprep.subr.mxu0 0.0
    %181 = vmatpush1.msra.mxu0 %v157
    %182 = vmatprep.subr.mxu0 0.0
    %183 = vmatpush1.msra.mxu0 %v158
    %184 = vmatprep.subr.mxu0 0.0
    %185 = vmatpush1.msra.mxu0 %v159
    %186 = vmatprep.subr.mxu0 0.0
    %187 = vmatpush1.msra.mxu0 %v160
    %188 = vmatprep.subr.mxu0 0.0
    %189 = vmatpush1.msra.mxu0 %v161
    %190 = vmatprep.subr.mxu0 0.0
    %191 = vmatpush1.msra.mxu0 %v162
    %192 = vmatprep.subr.mxu0 0.0
    %193 = vmatpush1.msra.mxu0 %v163
    %194 = vmatprep.subr.mxu0 0.0
    %195 = vmatpush1.msra.mxu0 %v164
    %196 = vmatprep.subr.mxu0 0.0
    %197 = vmatpush1.msra.mxu0 %v165
    %198 = vmatprep.subr.mxu0 0.0
    %199 = vmatpush1.msra.mxu0 %v166
    %200 = vmatprep.subr.mxu0 0.0
    %201 = vmatpush1.msra.mxu0 %v167
    %202 = vmatprep.subr.mxu0 0.0
    %203 = vmatpush1.msra.mxu0 %v168
    %204 = vmatprep.subr.mxu0 0.0
    %205 = vmatpush1.msra.mxu0 %v169
    %206 = vmatprep.subr.mxu0 0.0
    %207 = vmatpush1.msra.mxu0 %v170
    %208 = vmatprep.subr.mxu0 0.0
    %209 = vmatpush1.msra.mxu0 %v171
    %210 = vmatprep.subr.mxu0 0.0
    %211 = vmatpush1.msra.mxu0 %v172
    %212 = vmatprep.subr.mxu0 0.0
    %213 = vmatpush1.msra.mxu0 0.0
    %214 = vmatprep.subr.mxu0 0.0
    %215 = vmatpush1.msra.mxu0 0.0
    %216 = vmatprep.subr.mxu0 0.0
    %217 = vmatpush1.msra.mxu0 0.0
    %218 = vmatprep.subr.mxu0 0.0
    %219 = vmatpush1.msra.mxu0 0.0
    %220 = vmatprep.subr.mxu0 0.0
    %221 = vmatpush1.msra.mxu0 0.0
    %222 = vmatprep.subr.mxu0 0.0
    %223 = vmatpush1.msra.mxu0 0.0
    %224 = vmatprep.subr.mxu0 0.0
    %225 = vmatpush1.msra.mxu0 0.0
    %226 = vmatprep.subr.mxu0 0.0
    %227 = vmatpush1.msra.mxu0 0.0
    %228 = vmatprep.subr.mxu0 0.0
    %229 = vmatpush1.msra.mxu0 0.0
    %230 = vmatprep.subr.mxu0 0.0
    %231 = vmatpush1.msra.mxu0 0.0
    %232 = vmatprep.subr.mxu0 0.0
    %233 = vmatpush1.msra.mxu0 0.0
    %234 = vmatprep.subr.mxu0 0.0
    %235 = vmatpush1.msra.mxu0 0.0
    %236 = vmatprep.subr.mxu0 0.0
    %237 = vmatpush1.msra.mxu0 0.0
    %238 = vmatprep.subr.mxu0 0.0
    %239 = vmatpush1.msra.mxu0 0.0
    %240 = vmatprep.subr.mxu0 0.0
    %241 = vmatpush1.msra.mxu0 0.0
    %242 = vmatprep.subr.mxu0 0.0
    %243 = vmatpush1.msra.mxu0 0.0
    %244 = vmatprep.mubr.f32.mxu0 0.0
    %245 = vmatmul.mubr.f32.gmra.mrb[0].mxu0 %v156
    %v246 = vpop.f32.mrb[0].mxu0
    %v247 = vadd.f32 %v178, %v246
    %v248 = vpop.f32.mrb[0].mxu0
    %249 = vdwg.mxu0
    %250 = vst [vmem:[#allocation8] sm:$0xff] %v247
    // Predicated region
    $region34: #{tpu_custom_call.1} parent=1 // pred_check
      _
    $region35: #{tpu_custom_call.1} parent=1 // pred_check_branch
      %252 = sbr.rel (0) target = $region37
    $region36: #{tpu_custom_call.1} parent=1 // pred_region
      %s254 = ssub.s32 128, 32
      %255 = vsyncadd [#allocation4], %s254
      %s256 = sshll.u32 [#allocation8], 4
      %s257 = int_to_ptr.vmem [resolvable:$true] %s256
      %262 = dma.vmem_to_hbm [thread:$0]  %s257, 32, %s5, [#allocation4], 32, 32, 2
    $region37: #{tpu_custom_call.1} parent=1 // pred_fallthru
      _
    // Predicated region
    $region38: #{tpu_custom_call.1} parent=1 // pred_check
      _
    $region39: #{tpu_custom_call.1} parent=1 // pred_check_branch
      %264 = sbr.rel (0) target = $region41
    $region40: #{tpu_custom_call.1} parent=1 // pred_region
      %265 = dma.done [#allocation4], 128
    $region41: #{tpu_custom_call.1} parent=1 // pred_fallthru
      _
    %266 = vsyncpa [#allocation3], 1
    %267 = vsyncpa [#allocation6], 1
    %268 = vsyncpa [#allocation4], 1

</llo_original>
